<compile_context>
chip_gen: v7x
topology: tpu7x:2x2x1
jax: 0.10.0
libtpu: 0.0.40
codegen_flags: <defaults>
</compile_context>

<pallas_src>
import math

import jax
import jax.numpy as jnp
from jax import lax
from jax.experimental import pallas as pl
from jax.experimental.pallas import tpu as pltpu


def _round_up(x, m):
    return (x + m - 1) // m * m


# ----------------------------------------------------------------------------
# Kernel: BertLMPredictionHead
#   h = LayerNorm(gelu(x @ Wd^T + bd)) ; scores[:, j*tn:(j+1)*tn] = h @ dec_j^T + b_j
# ----------------------------------------------------------------------------
def lm_head_kernel(x_ref, wd_ref, bd_ref, gamma_ref, beta_ref,
                   dec_ref, dbias_ref, out_ref, h_ref):
    # Stage 1: dense + gelu + LayerNorm, once per row tile (first vocab tile),
    # cached in VMEM scratch and reused for every vocab tile of this row tile.
    # Correct ONLY because the vocab grid axis is innermost and "arbitrary".
    @pl.when(pl.program_id(1) == 0)
    def _():
        x = x_ref[...]
        # x @ dense_w.T  (dense_w kept in torch [out, in] layout; NT contraction
        # folds into the MXU, no materialized transpose)
        h = lax.dot_general(x, wd_ref[...],
                            dimension_numbers=(((1,), (1,)), ((), ())),
                            preferred_element_type=jnp.float32)
        h = h + bd_ref[...].astype(jnp.float32)
        # erf-gelu (matches torch erf gelu exactly)
        h = h * 0.5 * (1.0 + lax.erf(h * (1.0 / math.sqrt(2.0))))
        # LayerNorm over last dim, biased variance, eps=1e-5
        mean = jnp.mean(h, axis=-1, keepdims=True)
        cent = h - mean
        var = jnp.mean(cent * cent, axis=-1, keepdims=True)
        h = cent * lax.rsqrt(var + 1e-5)
        h = h * gamma_ref[...].astype(jnp.float32) + beta_ref[...].astype(jnp.float32)
        h_ref[...] = h.astype(h_ref.dtype)

    # Stage 2: decoder vocab tile: h @ dec_tile.T  (dec tile is [tn, H])
    scores = lax.dot_general(h_ref[...], dec_ref[...],
                             dimension_numbers=(((1,), (1,)), ((), ())),
                             preferred_element_type=jnp.float32)
    scores = scores + dbias_ref[...].astype(jnp.float32)
    out_ref[...] = scores.astype(out_ref.dtype)


# ----------------------------------------------------------------------------
# Wrapper
# ----------------------------------------------------------------------------
def bert_pretraining_heads(sequence_output, pooled_output, params, *,
                           tm=1024, tn=1024, out_dtype=None, compute_dtype=None):
    """sequence_output: [B, S, H], pooled_output: [B, H] or None.

    tm: row tile over B*S (multiple of 8 f32 / 16 bf16; auto-clamped; keeps
        >= 2 row tiles when possible so the row axis splits across TCs).
    tn: vocab tile over V (multiple of 128; auto-clamped).
    out_dtype: logits dtype (defaults to input dtype; pass bf16 in training to
               halve logits writeback).
    compute_dtype: optional cast for x / dense_w / decoder_w (e.g. jnp.bfloat16
               for bf16-native MXU rates and halved decoder DMA — biggest win
               on v5e). f32 accumulation is kept regardless.
    """
    B, S, H = sequence_output.shape
    V = params["decoder_w"].shape[0]          # decoder weight is [V, H] (torch layout)
    in_dtype = sequence_output.dtype
    out_dtype = in_dtype if out_dtype is None else out_dtype
    cdt = in_dtype if compute_dtype is None else jnp.dtype(compute_dtype)

    M = B * S
    pack = 16 if cdt == jnp.bfloat16 else 8

    # Clamp tiles so big defaults still work at small shapes.
    tm = max(pack, min(_round_up(tm, pack), _round_up(M, pack)))
    # Prefer >= 2 row tiles so dimension_semantics "parallel" on the row axis
    # actually splits work across the 2 TensorCores on v7x.
    if M > pack and _round_up(M, tm) // tm < 2:
        tm = max(pack, _round_up((M + 1) // 2, pack))
    tn = max(128, min(_round_up(tn, 128), _round_up(V, 128)))
    M_pad = _round_up(M, tm)
    V_pad = _round_up(V, tn)

    x2d = sequence_output.reshape(M, H).astype(cdt)
    if M_pad != M:
        x2d = jnp.pad(x2d, ((0, M_pad - M), (0, 0)))

    # Keep torch [out, in] layouts: no materialized transposes in the wrapper.
    wd = params["dense_w"].astype(cdt)        # (H, H)
    bd = params["dense_b"].reshape(1, H)
    gamma = params["ln_gamma"].reshape(1, H)
    beta = params["ln_beta"].reshape(1, H)
    dec = params["decoder_w"].astype(cdt)     # (V, H) tied embedding
    dbias = params["decoder_bias"].reshape(1, V)
    if V_pad != V:
        dec = jnp.pad(dec, ((0, V_pad - V), (0, 0)))
        dbias = jnp.pad(dbias, ((0, 0), (0, V_pad - V)))

    grid = (M_pad // tm, V_pad // tn)
    n_row_tiles = grid[0]

    isz = jnp.dtype(cdt).itemsize
    osz = jnp.dtype(out_dtype).itemsize
    # VMEM footprint: double-buffered streamed tiles + resident weights + scratch.
    est = (2 * tm * H * isz          # x row tiles
           + 2 * tn * H * isz        # decoder weight tiles
           + 2 * tm * tn * osz       # output tiles
           + 2 * tn * 4              # decoder bias tiles
           + H * H * isz + 4 * H * 4 # dense weight + bias/LN params
           + tm * H * isz)           # h scratch
    # Per-generation cap with 1/8 headroom for compiler internals/spills:
    # ~56 MiB usable on v7x (64 MiB physical), ~112 MiB on v5e/v6e (128 MiB).
    try:
        phys_vmem = int(pltpu.get_tpu_info().vmem_capacity_bytes)
    except Exception:
        phys_vmem = 64 * 1024 * 1024
    vmem_cap = phys_vmem * 7 // 8
    vmem_limit = min(max(int(est) * 5 // 4 + (4 << 20), 16 << 20), vmem_cap)

    cost = pl.CostEstimate(
        flops=2 * M_pad * H * H + 2 * M_pad * H * V_pad,
        transcendentals=M_pad * H,
        # Decoder (and its bias) are re-streamed once per row tile.
        bytes_accessed=(M_pad * H * isz
                        + H * H * isz
                        + V_pad * H * isz * n_row_tiles
                        + V_pad * 4 * n_row_tiles
                        + M_pad * V_pad * osz
                        + 4 * H * 4),
    )

    pred = pl.pallas_call(
        lm_head_kernel,
        out_shape=jax.ShapeDtypeStruct((M_pad, V_pad), out_dtype),
        grid_spec=pltpu.PrefetchScalarGridSpec(
            num_scalar_prefetch=0,
            grid=grid,
            in_specs=[
                pl.BlockSpec((tm, H), lambda i, j: (i, 0)),   # x row tile
                pl.BlockSpec((H, H), lambda i, j: (0, 0)),    # dense weight (resident)
                pl.BlockSpec((1, H), lambda i, j: (0, 0)),    # dense bias
                pl.BlockSpec((1, H), lambda i, j: (0, 0)),    # LN gamma
                pl.BlockSpec((1, H), lambda i, j: (0, 0)),    # LN beta
                pl.BlockSpec((tn, H), lambda i, j: (j, 0)),   # decoder weight tile (streamed)
                pl.BlockSpec((1, tn), lambda i, j: (0, j)),   # decoder bias tile
            ],
            out_specs=pl.BlockSpec((tm, tn), lambda i, j: (i, j)),
            scratch_shapes=[pltpu.VMEM((tm, H), cdt)],        # cached LN output
        ),
        compiler_params=pltpu.CompilerParams(
            # Row axis parallel (megacore); vocab axis MUST stay "arbitrary"
            # (h_ref caching depends on sequential vocab iteration per row tile).
            dimension_semantics=("parallel", "arbitrary"),
            vmem_limit_bytes=vmem_limit,
        ),
        cost_estimate=cost,
    )(x2d, wd, bd, gamma, beta, dec, dbias)

    prediction_scores = pred[:M, :V].reshape(B, S, V)
    # TODO(synk): for pretraining, fusing the vocab log-softmax / cross-entropy
    # into the vocab-tile loop would avoid writing the full M x V logits to HBM.

    if pooled_output is None:
        seq_relationship_score = None
    else:
        # (B, H) @ (H, num_labels) is tiny (lane width 2 -> masked stores); a
        # dedicated Pallas kernel is pure launch overhead, so leave it to XLA.
        seq_relationship_score = (
            pooled_output @ params["seq_rel_w"].T + params["seq_rel_b"]
        ).astype(pooled_output.dtype)

    return prediction_scores, seq_relationship_score


# ----------------------------------------------------------------------------
# Pure-JAX reference for sanity checking
# ----------------------------------------------------------------------------
def reference(sequence_output, pooled_output, params):
    h = sequence_output @ params["dense_w"].T + params["dense_b"]
    h = h * 0.5 * (1.0 + lax.erf(h / math.sqrt(2.0)))
    mean = jnp.mean(h, axis=-1, keepdims=True)
    var = jnp.mean((h - mean) ** 2, axis=-1, keepdims=True)
    h = (h - mean) / jnp.sqrt(var + 1e-5)
    h = h * params["ln_gamma"] + params["ln_beta"]
    scores = h @ params["decoder_w"].T + params["decoder_bias"]
    seq_rel = None
    if pooled_output is not None:
        seq_rel = pooled_output @ params["seq_rel_w"].T + params["seq_rel_b"]
    return scores, seq_rel


def _make_params(key, H, V, L):
    ks = jax.random.split(key, 5)
    return {
        "dense_w": 0.05 * jax.random.normal(ks[0], (H, H), jnp.float32),   # nn.Linear(H, H).weight
        "dense_b": 0.05 * jax.random.normal(ks[1], (H,), jnp.float32),
        "ln_gamma": jnp.ones((H,), jnp.float32),
        "ln_beta": jnp.zeros((H,), jnp.float32),
        "decoder_w": 0.05 * jax.random.normal(ks[2], (V, H), jnp.float32),  # tied embedding weights [V, H]
        "decoder_bias": jnp.zeros((V,), jnp.float32),                       # self.bias init = zeros
        "seq_rel_w": 0.05 * jax.random.normal(ks[3], (L, H), jnp.float32),  # nn.Linear(H, num_labels).weight
        "seq_rel_b": 0.05 * jax.random.normal(ks[4], (L,), jnp.float32),
    }


if __name__ == "__main__":
    key = jax.random.PRNGKey(0)
    k_param, k_x, k_p, k_param2, k_x2 = jax.random.split(key, 5)

    # --- Test 1: small shapes (exercises >=2 row tiles / megacore split) ----
    B, S, H, V, L = 2, 8, 32, 128, 2
    params = _make_params(k_param, H, V, L)
    sequence_output = jax.random.normal(k_x, (B, S, H), jnp.float32)
    pooled_output = jax.random.normal(k_p, (B, H), jnp.float32)

    # TODO(synk): relax_projection>1 / fp32_embedding half-precision paths not
    # exercised (config defaults make them no-ops in this forward).

    pred, seq_rel = bert_pretraining_heads(sequence_output, pooled_output, params)
    pred = jax.block_until_ready(pred)
    seq_rel = jax.block_until_ready(seq_rel)

    ref_pred, ref_rel = reference(sequence_output, pooled_output, params)
    assert pred.shape == (B, S, V) and seq_rel.shape == (B, L)
    assert jnp.allclose(pred, ref_pred, atol=1e-4, rtol=1e-4)
    assert jnp.allclose(seq_rel, ref_rel, atol=1e-4, rtol=1e-4)

    # pooled_output=None branch
    pred_none, none_rel = bert_pretraining_heads(sequence_output, None, params)
    jax.block_until_ready(pred_none)
    assert none_rel is None

    # --- Test 2: ragged shapes (exercise row/vocab padding path) ------------
    B2, S2, H2, V2 = 2, 5, 32, 200        # B*S=10 (not tile aligned), V not %128
    params2 = _make_params(k_param2, H2, V2, L)
    seq2 = jax.random.normal(k_x2, (B2, S2, H2), jnp.float32)
    pred2, _ = bert_pretraining_heads(seq2, None, params2)
    pred2 = jax.block_until_ready(pred2)
    ref2, _ = reference(seq2, None, params2)
    assert pred2.shape == (B2, S2, V2)
    assert jnp.allclose(pred2, ref2, atol=1e-4, rtol=1e-4)

    # --- Test 3: bf16 compute path (v5e-style mixed precision) --------------
    pred3, _ = bert_pretraining_heads(sequence_output, None, params,
                                      compute_dtype=jnp.bfloat16)
    pred3 = jax.block_until_ready(pred3)
    assert jnp.allclose(pred3.astype(jnp.float32), ref_pred, atol=5e-2, rtol=5e-2)

    print("KERNEL_OK")
</pallas_src>

<mosaic_0001>
module attributes {stable_mosaic.version = 11 : i64} {
  func.func @lm_head_kernel(%arg0: i32, %arg1: i32, %arg2: memref<8x32xf32, #tpu.memory_space<vmem>>, %arg3: memref<32x32xf32, #tpu.memory_space<vmem>>, %arg4: memref<1x32xf32, #tpu.memory_space<vmem>>, %arg5: memref<1x32xf32, #tpu.memory_space<vmem>>, %arg6: memref<1x32xf32, #tpu.memory_space<vmem>>, %arg7: memref<128x32xf32, #tpu.memory_space<vmem>>, %arg8: memref<1x128xf32, #tpu.memory_space<vmem>>, %arg9: memref<8x128xf32, #tpu.memory_space<vmem>>, %arg10: memref<8x32xf32, #tpu.memory_space<vmem>>) attributes {dimension_semantics = [#tpu.dimension_semantics<parallel>, #tpu.dimension_semantics<arbitrary>], iteration_bounds = array<i64: 2, 1>, scalar_prefetch = 0 : i64, scratch_operands = 1 : i64, tpu.core_type = #tpu.core_type<tc>, window_params = [{transform_indices = @transform_0, window_bounds = array<i64: 8, 32>}, {pipeline_mode = #tpu.pipeline_mode<synchronous>, transform_indices = @transform_1, window_bounds = array<i64: 32, 32>}, {pipeline_mode = #tpu.pipeline_mode<synchronous>, transform_indices = @transform_2, window_bounds = array<i64: 1, 32>}, {pipeline_mode = #tpu.pipeline_mode<synchronous>, transform_indices = @transform_3, window_bounds = array<i64: 1, 32>}, {pipeline_mode = #tpu.pipeline_mode<synchronous>, transform_indices = @transform_4, window_bounds = array<i64: 1, 32>}, {transform_indices = @transform_5, window_bounds = array<i64: 128, 32>}, {transform_indices = @transform_6, window_bounds = array<i64: 1, 128>}, {transform_indices = @transform_7, window_bounds = array<i64: 8, 128>}]} {
    %c0_i32 = arith.constant 0 : i32
    %0 = arith.cmpi eq, %arg1, %c0_i32 : i32
    %1 = arith.extui %0 : i1 to i32
    %c0_i32_0 = arith.constant 0 : i32
    %2 = arith.cmpi ne, %1, %c0_i32_0 : i32
    scf.if %2 {
      %c0_8 = arith.constant 0 : index
      %c0_9 = arith.constant 0 : index
      %10 = vector.load %arg2[%c0_8, %c0_9] : memref<8x32xf32, #tpu.memory_space<vmem>>, vector<8x32xf32>
      %c0_10 = arith.constant 0 : index
      %c0_11 = arith.constant 0 : index
      %11 = vector.load %arg3[%c0_10, %c0_11] : memref<32x32xf32, #tpu.memory_space<vmem>>, vector<32x32xf32>
      %cst_12 = arith.constant dense<0.000000e+00> : vector<8x32xf32>
      %12 = tpu.matmul %10, %11, %cst_12 {dimension_numbers = #tpu.dot_dimension_numbers<[1], [1], [0], [0], [0, 0, 1, 0], [], []>} : vector<8x32xf32>, vector<32x32xf32>, vector<8x32xf32> -> vector<8x32xf32>
      %c0_13 = arith.constant 0 : index
      %c0_14 = arith.constant 0 : index
      %13 = vector.load %arg4[%c0_13, %c0_14] : memref<1x32xf32, #tpu.memory_space<vmem>>, vector<1x32xf32>
      %14 = vector.broadcast %13 : vector<1x32xf32> to vector<8x32xf32>
      %15 = arith.addf %12, %14 : vector<8x32xf32>
      %cst_15 = arith.constant 5.000000e-01 : f32
      %16 = vector.broadcast %cst_15 : f32 to vector<8x32xf32>
      %17 = arith.mulf %15, %16 : vector<8x32xf32>
      %cst_16 = arith.constant 0.707106769 : f32
      %18 = vector.broadcast %cst_16 : f32 to vector<8x32xf32>
      %19 = arith.mulf %15, %18 : vector<8x32xf32>
      %20 = math.erf %19 : vector<8x32xf32>
      %cst_17 = arith.constant 1.000000e+00 : f32
      %21 = vector.broadcast %cst_17 : f32 to vector<8x32xf32>
      %22 = arith.addf %21, %20 : vector<8x32xf32>
      %23 = arith.mulf %17, %22 : vector<8x32xf32>
      %cst_18 = arith.constant dense<0.000000e+00> : vector<8xf32>
      %24 = vector.multi_reduction <add>, %23, %cst_18 [1] : vector<8x32xf32> to vector<8xf32>
      %25 = vector.shape_cast %24 : vector<8xf32> to vector<8x1xf32>
      %cst_19 = arith.constant 3.200000e+01 : f32
      %26 = vector.broadcast %cst_19 : f32 to vector<8x1xf32>
      %27 = arith.divf %25, %26 : vector<8x1xf32>
      %28 = vector.broadcast %27 : vector<8x1xf32> to vector<8x32xf32>
      %29 = arith.subf %23, %28 : vector<8x32xf32>
      %30 = arith.mulf %29, %29 : vector<8x32xf32>
      %cst_20 = arith.constant dense<0.000000e+00> : vector<8xf32>
      %31 = vector.multi_reduction <add>, %30, %cst_20 [1] : vector<8x32xf32> to vector<8xf32>
      %32 = vector.shape_cast %31 : vector<8xf32> to vector<8x1xf32>
      %cst_21 = arith.constant 3.200000e+01 : f32
      %33 = vector.broadcast %cst_21 : f32 to vector<8x1xf32>
      %34 = arith.divf %32, %33 : vector<8x1xf32>
      %cst_22 = arith.constant 9.99999974E-6 : f32
      %35 = vector.broadcast %cst_22 : f32 to vector<8x1xf32>
      %36 = arith.addf %34, %35 : vector<8x1xf32>
      %37 = math.rsqrt %36 : vector<8x1xf32>
      %38 = vector.broadcast %37 : vector<8x1xf32> to vector<8x32xf32>
      %39 = arith.mulf %29, %38 : vector<8x32xf32>
      %c0_23 = arith.constant 0 : index
      %c0_24 = arith.constant 0 : index
      %40 = vector.load %arg5[%c0_23, %c0_24] : memref<1x32xf32, #tpu.memory_space<vmem>>, vector<1x32xf32>
      %41 = vector.broadcast %40 : vector<1x32xf32> to vector<8x32xf32>
      %42 = arith.mulf %39, %41 : vector<8x32xf32>
      %c0_25 = arith.constant 0 : index
      %c0_26 = arith.constant 0 : index
      %43 = vector.load %arg6[%c0_25, %c0_26] : memref<1x32xf32, #tpu.memory_space<vmem>>, vector<1x32xf32>
      %44 = vector.broadcast %43 : vector<1x32xf32> to vector<8x32xf32>
      %45 = arith.addf %42, %44 : vector<8x32xf32>
      %c0_27 = arith.constant 0 : index
      %c0_28 = arith.constant 0 : index
      %46 = vector.load %arg10[%c0_27, %c0_28] : memref<8x32xf32, #tpu.memory_space<vmem>>, vector<8x32xf32>
      tpu.vector_store %arg10[%c0_27, %c0_28], %45 {strides = array<i32>} : memref<8x32xf32, #tpu.memory_space<vmem>>, vector<8x32xf32>,
    } else {
    }
    %c0 = arith.constant 0 : index
    %c0_1 = arith.constant 0 : index
    %3 = vector.load %arg10[%c0, %c0_1] : memref<8x32xf32, #tpu.memory_space<vmem>>, vector<8x32xf32>
    %c0_2 = arith.constant 0 : index
    %c0_3 = arith.constant 0 : index
    %4 = vector.load %arg7[%c0_2, %c0_3] : memref<128x32xf32, #tpu.memory_space<vmem>>, vector<128x32xf32>
    %cst = arith.constant dense<0.000000e+00> : vector<8x128xf32>
    %5 = tpu.matmul %3, %4, %cst {dimension_numbers = #tpu.dot_dimension_numbers<[1], [1], [0], [0], [0, 0, 1, 0], [], []>} : vector<8x32xf32>, vector<128x32xf32>, vector<8x128xf32> -> vector<8x128xf32>
    %c0_4 = arith.constant 0 : index
    %c0_5 = arith.constant 0 : index
    %6 = vector.load %arg8[%c0_4, %c0_5] : memref<1x128xf32, #tpu.memory_space<vmem>>, vector<1x128xf32>
    %7 = vector.broadcast %6 : vector<1x128xf32> to vector<8x128xf32>
    %8 = arith.addf %5, %7 : vector<8x128xf32>
    %c0_6 = arith.constant 0 : index
    %c0_7 = arith.constant 0 : index
    %9 = vector.load %arg9[%c0_6, %c0_7] : memref<8x128xf32, #tpu.memory_space<vmem>>, vector<8x128xf32>
    tpu.vector_store %arg9[%c0_6, %c0_7], %8 {strides = array<i32>} : memref<8x128xf32, #tpu.memory_space<vmem>>, vector<8x128xf32>,
    return
  }
  func.func @transform_0(%arg0: i32, %arg1: i32) -> (i32, i32) {
    %c0_i32 = arith.constant 0 : i32
    %c0_i32_0 = arith.constant 0 : i32
    return %arg0, %c0_i32 : i32, i32
  }
  func.func @transform_1(%arg0: i32, %arg1: i32) -> (i32, i32) {
    %c0_i32 = arith.constant 0 : i32
    %c0_i32_0 = arith.constant 0 : i32
    %c0_i32_1 = arith.constant 0 : i32
    return %c0_i32, %c0_i32_0 : i32, i32
  }
  func.func @transform_2(%arg0: i32, %arg1: i32) -> (i32, i32) {
    %c0_i32 = arith.constant 0 : i32
    %c0_i32_0 = arith.constant 0 : i32
    %c0_i32_1 = arith.constant 0 : i32
    return %c0_i32, %c0_i32_0 : i32, i32
  }
  func.func @transform_3(%arg0: i32, %arg1: i32) -> (i32, i32) {
    %c0_i32 = arith.constant 0 : i32
    %c0_i32_0 = arith.constant 0 : i32
    %c0_i32_1 = arith.constant 0 : i32
    return %c0_i32, %c0_i32_0 : i32, i32
  }
  func.func @transform_4(%arg0: i32, %arg1: i32) -> (i32, i32) {
    %c0_i32 = arith.constant 0 : i32
    %c0_i32_0 = arith.constant 0 : i32
    %c0_i32_1 = arith.constant 0 : i32
    return %c0_i32, %c0_i32_0 : i32, i32
  }
  func.func @transform_5(%arg0: i32, %arg1: i32) -> (i32, i32) {
    %c0_i32 = arith.constant 0 : i32
    %c0_i32_0 = arith.constant 0 : i32
    return %arg1, %c0_i32 : i32, i32
  }
  func.func @transform_6(%arg0: i32, %arg1: i32) -> (i32, i32) {
    %c0_i32 = arith.constant 0 : i32
    %c0_i32_0 = arith.constant 0 : i32
    return %c0_i32, %arg1 : i32, i32
  }
  func.func @transform_7(%arg0: i32, %arg1: i32) -> (i32, i32) {
    %c0_i32 = arith.constant 0 : i32
    return %arg0, %arg1 : i32, i32
  }
}

</mosaic_0001>

<llo_original>
// kernel: tpu_custom_call.1
$region0: #{tpu_custom_call.1}
  #allocation0 [shape = 'u32[]', space=smem, size = 0x4, offset = 0x4, fixed_abs, tag = 'smem constant byte address 0x4 - core index']
  #allocation1 [shape = 'u32[144,128]{1,0:T(1,128)}', space=vmem, size = 0x12000, scoped, tag = 'internal scratch']
  #allocation2 [shape = 'f32[8,32]{1,0:T(8,128)}', space=vmem, size = 0x1000, scoped, tag = 'scratch operand']
  %s0 = inlined_call_operand.vmem [shape: f32[16,32], index: 0, kind: input, shape index: {}]
  %s1 = inlined_call_operand.vmem [shape: f32[32,32], index: 1, kind: input, shape index: {}]
  %s2 = inlined_call_operand.vmem [shape: f32[1,32], index: 2, kind: input, shape index: {}]
  %s3 = inlined_call_operand.vmem [shape: f32[1,32], index: 3, kind: input, shape index: {}]
  %s4 = inlined_call_operand.vmem [shape: f32[1,32], index: 4, kind: input, shape index: {}]
  %s5 = inlined_call_operand.vmem [shape: f32[128,32], index: 5, kind: input, shape index: {}]
  %s6 = inlined_call_operand.vmem [shape: f32[1,128], index: 6, kind: input, shape index: {}]
  %s7 = inlined_call_operand.hbm [shape: f32[16,128], index: 7, kind: output, shape index: {}]
  %s8 = sld [smem:[#allocation0]]
  $region65: #{tpu_custom_call.1} parent=0
    _
  %s10 = ssub.s32 1, %s8
  %s11 = scalar_select 0, %s10, %s8
  $region1: #{tpu_custom_call.1} parent=0
    #allocation3 [shape = 'u8[8192]{0}', space=vmem, size = 0x2000, scoped, tag = 'output window, operand 0']
    #allocation4 [shape = 's32[2]{0}', space=sflag, size = 0x8, scoped, tag = 'scoped memory for tpu_custom_call.1']
    %12 = vsyncpa [#allocation4], 0
    %s13 = scalar_lea.sflag [#allocation4], 1
    %14 = vsyncpa %s13, 0
    loop: start=0, step=1, limit=4
    $region2: #{tpu_custom_call.1} parent=1 // loop_pre_header
      _
    $region3: #{tpu_custom_call.1} parent=1 // loop_header
      %s16 = sphi 0, %s20
      %p17 = scmp.ge.s32.totalorder %s16, 4
      %s23 = sphi 0, %s35
      %s24 = sphi 0, %s31
      %s25 = sphi 0, %s23
      %s26 = sphi 0, %s24
      %s27 = sphi 0, %s25
      %s28 = sphi 0, %s26
      %s38 = sphi 0, %s40
      %s41 = sphi 0, %s38
      %s42 = sphi 0, %s41
      %s58 = sphi 0, %s42
      %s62 = sphi 0, %s62
      %s64 = sphi 0, %s62
      %s65 = sphi 0, %s64
      %s79 = sphi 0, %s65
      %s83 = sphi 0, %s83
      %s85 = sphi 0, %s83
      %s86 = sphi 0, %s85
      %s100 = sphi 0, %s86
      %s104 = sphi 0, %s104
      %s106 = sphi 0, %s104
      %s107 = sphi 0, %s106
      %s121 = sphi 0, %s107
      %s125 = sphi 0, %s125
      %s127 = sphi 0, %s125
      %s128 = sphi 0, %s127
      %s142 = sphi 0, %s128
      %s148 = sphi 0, %s150
      %s151 = sphi 0, %s148
      %s152 = sphi 0, %s151
      %s168 = sphi 0, %s152
      %s174 = sphi 0, %s176
      %s177 = sphi 0, %s174
      %s178 = sphi 0, %s177
      %s194 = sphi 0, %s178
      %s202 = sphi 0, %s204
      %s205 = sphi 0, %s202
      %s206 = sphi 0, %s205
      %s222 = sphi 0, %s206
    $region4: #{tpu_custom_call.1} parent=1 // loop_header_branch
      %19 = sbr.rel (%p17) target = $region8
    $region5: #{tpu_custom_call.1} parent=1 // loop_body
      %s21 = ssub.s32 %s16, 1
      %s22 = ssub.s32 %s16, 2
      %s29 = sadd.s32 1, %s24
      %p30 = scmp.ge.s32.totalorder %s29, 1
      %s31 = scalar_select %p30, 0, %s29
      %s32 = sadd.s32 1, %s23
      %s33 = scalar_select %p30, %s32, %s23
      %p34 = scmp.ge.s32.totalorder %s33, 2
      %s35 = scalar_select %p34, 0, %s33
      %s36 = ssub.s32 %s23, %s35
      %p37 = scmp.eq.s32.totalorder %s36, 0
      %s39 = sadd.s32 %s38, 1
      %s40 = scalar_select %p37, %s38, %s39
      %p43 = pneg %p37
      %p44 = scmp.eq.s32.totalorder %s16, 1
      %p45 = por %p43, %p44
      %p46 = scmp.ne.s32.totalorder %s38, %s41
      %p47 = scmp.eq.s32.totalorder %s16, 0
      %p48 = por %p46, %p47
      %p49 = scmp.ne.s32.totalorder %s38, %s41
      %p50 = scmp.eq.s32.totalorder %s21, 1
      %p51 = por %p49, %p50
      %p52 = scmp.ne.s32.totalorder %s41, %s42
      %p53 = scmp.eq.s32.totalorder %s21, 0
      %p54 = por %p52, %p53
      %p55 = scmp.ne.s32.totalorder %s41, %s42
      %p56 = scmp.eq.s32.totalorder %s22, 1
      %p57 = por %p55, %p56
      %p59 = scmp.ne.s32.totalorder %s42, %s58
      %p60 = scmp.eq.s32.totalorder %s22, 0
      %p61 = por %p59, %p60
      %s63 = sadd.s32 %s62, 1
      %p66 = scmp.eq.s32.totalorder %s16, 1
      %p67 = scmp.ne.s32.totalorder %s62, %s64
      %p68 = scmp.eq.s32.totalorder %s16, 0
      %p69 = por %p67, %p68
      %p70 = scmp.ne.s32.totalorder %s62, %s64
      %p71 = scmp.eq.s32.totalorder %s21, 1
      %p72 = por %p70, %p71
      %p73 = scmp.ne.s32.totalorder %s64, %s65
      %p74 = scmp.eq.s32.totalorder %s21, 0
      %p75 = por %p73, %p74
      %p76 = scmp.ne.s32.totalorder %s64, %s65
      %p77 = scmp.eq.s32.totalorder %s22, 1
      %p78 = por %p76, %p77
      %p80 = scmp.ne.s32.totalorder %s65, %s79
      %p81 = scmp.eq.s32.totalorder %s22, 0
      %p82 = por %p80, %p81
      %s84 = sadd.s32 %s83, 1
      %p87 = scmp.eq.s32.totalorder %s16, 1
      %p88 = scmp.ne.s32.totalorder %s83, %s85
      %p89 = scmp.eq.s32.totalorder %s16, 0
      %p90 = por %p88, %p89
      %p91 = scmp.ne.s32.totalorder %s83, %s85
      %p92 = scmp.eq.s32.totalorder %s21, 1
      %p93 = por %p91, %p92
      %p94 = scmp.ne.s32.totalorder %s85, %s86
      %p95 = scmp.eq.s32.totalorder %s21, 0
      %p96 = por %p94, %p95
      %p97 = scmp.ne.s32.totalorder %s85, %s86
      %p98 = scmp.eq.s32.totalorder %s22, 1
      %p99 = por %p97, %p98
      %p101 = scmp.ne.s32.totalorder %s86, %s100
      %p102 = scmp.eq.s32.totalorder %s22, 0
      %p103 = por %p101, %p102
      %s105 = sadd.s32 %s104, 1
      %p108 = scmp.eq.s32.totalorder %s16, 1
      %p109 = scmp.ne.s32.totalorder %s104, %s106
      %p110 = scmp.eq.s32.totalorder %s16, 0
      %p111 = por %p109, %p110
      %p112 = scmp.ne.s32.totalorder %s104, %s106
      %p113 = scmp.eq.s32.totalorder %s21, 1
      %p114 = por %p112, %p113
      %p115 = scmp.ne.s32.totalorder %s106, %s107
      %p116 = scmp.eq.s32.totalorder %s21, 0
      %p117 = por %p115, %p116
      %p118 = scmp.ne.s32.totalorder %s106, %s107
      %p119 = scmp.eq.s32.totalorder %s22, 1
      %p120 = por %p118, %p119
      %p122 = scmp.ne.s32.totalorder %s107, %s121
      %p123 = scmp.eq.s32.totalorder %s22, 0
      %p124 = por %p122, %p123
      %s126 = sadd.s32 %s125, 1
      %p129 = scmp.eq.s32.totalorder %s16, 1
      %p130 = scmp.ne.s32.totalorder %s125, %s127
      %p131 = scmp.eq.s32.totalorder %s16, 0
      %p132 = por %p130, %p131
      %p133 = scmp.ne.s32.totalorder %s125, %s127
      %p134 = scmp.eq.s32.totalorder %s21, 1
      %p135 = por %p133, %p134
      %p136 = scmp.ne.s32.totalorder %s127, %s128
      %p137 = scmp.eq.s32.totalorder %s21, 0
      %p138 = por %p136, %p137
      %p139 = scmp.ne.s32.totalorder %s127, %s128
      %p140 = scmp.eq.s32.totalorder %s22, 1
      %p141 = por %p139, %p140
      %p143 = scmp.ne.s32.totalorder %s128, %s142
      %p144 = scmp.eq.s32.totalorder %s22, 0
      %p145 = por %p143, %p144
      %s146 = ssub.s32 %s24, %s31
      %p147 = scmp.eq.s32.totalorder %s146, 0
      %s149 = sadd.s32 %s148, 1
      %s150 = scalar_select %p147, %s148, %s149
      %p153 = pneg %p147
      %p154 = scmp.eq.s32.totalorder %s16, 1
      %p155 = por %p153, %p154
      %p156 = scmp.ne.s32.totalorder %s148, %s151
      %p157 = scmp.eq.s32.totalorder %s16, 0
      %p158 = por %p156, %p157
      %p159 = scmp.ne.s32.totalorder %s148, %s151
      %p160 = scmp.eq.s32.totalorder %s21, 1
      %p161 = por %p159, %p160
      %p162 = scmp.ne.s32.totalorder %s151, %s152
      %p163 = scmp.eq.s32.totalorder %s21, 0
      %p164 = por %p162, %p163
      %p165 = scmp.ne.s32.totalorder %s151, %s152
      %p166 = scmp.eq.s32.totalorder %s22, 1
      %p167 = por %p165, %p166
      %p169 = scmp.ne.s32.totalorder %s152, %s168
      %p170 = scmp.eq.s32.totalorder %s22, 0
      %p171 = por %p169, %p170
      %s172 = ssub.s32 %s24, %s31
      %p173 = scmp.eq.s32.totalorder %s172, 0
      %s175 = sadd.s32 %s174, 1
      %s176 = scalar_select %p173, %s174, %s175
      %p179 = pneg %p173
      %p180 = scmp.eq.s32.totalorder %s16, 1
      %p181 = por %p179, %p180
      %p182 = scmp.ne.s32.totalorder %s174, %s177
      %p183 = scmp.eq.s32.totalorder %s16, 0
      %p184 = por %p182, %p183
      %p185 = scmp.ne.s32.totalorder %s174, %s177
      %p186 = scmp.eq.s32.totalorder %s21, 1
      %p187 = por %p185, %p186
      %p188 = scmp.ne.s32.totalorder %s177, %s178
      %p189 = scmp.eq.s32.totalorder %s21, 0
      %p190 = por %p188, %p189
      %p191 = scmp.ne.s32.totalorder %s177, %s178
      %p192 = scmp.eq.s32.totalorder %s22, 1
      %p193 = por %p191, %p192
      %p195 = scmp.ne.s32.totalorder %s178, %s194
      %p196 = scmp.eq.s32.totalorder %s22, 0
      %p197 = por %p195, %p196
      %s198 = ssub.s32 %s23, %s35
      %s199 = ssub.s32 %s24, %s31
      %s200 = sor.u32 %s198, %s199
      %p201 = scmp.eq.s32.totalorder %s200, 0
      %s203 = sadd.s32 %s202, 1
      %s204 = scalar_select %p201, %s202, %s203
      %p207 = pneg %p201
      %p208 = scmp.eq.s32.totalorder %s16, 1
      %p209 = por %p207, %p208
      %p210 = scmp.ne.s32.totalorder %s202, %s205
      %p211 = scmp.eq.s32.totalorder %s16, 0
      %p212 = por %p210, %p211
      %p213 = scmp.ne.s32.totalorder %s202, %s205
      %p214 = scmp.eq.s32.totalorder %s21, 1
      %p215 = por %p213, %p214
      %p216 = scmp.ne.s32.totalorder %s205, %s206
      %p217 = scmp.eq.s32.totalorder %s21, 0
      %p218 = por %p216, %p217
      %p219 = scmp.ne.s32.totalorder %s205, %s206
      %p220 = scmp.eq.s32.totalorder %s22, 1
      %p221 = por %p219, %p220
      %p223 = scmp.ne.s32.totalorder %s206, %s222
      %p224 = scmp.eq.s32.totalorder %s22, 0
      %p225 = por %p223, %p224
      %p226 = scmp.le.s32.totalorder 1, %s16
      %p227 = scmp.lt.s32.totalorder %s16, 3
      %p228 = pnand %p226, %p227
      %p229 = pneg %p228
      // Predicated region
      $region9: #{tpu_custom_call.1} parent=5 // pred_check
        _
      $region10: #{tpu_custom_call.1} parent=5 // pred_check_branch
        %231 = sbr.rel (%p228) target = $region12
      $region11: #{tpu_custom_call.1} parent=5 // pred_region
        %s232 = ssub.s32 %s16, 1
        // Predicated region
        $region13: #{tpu_custom_call.1} parent=11 // pred_check
          %p233 = pneg %p75
        $region14: #{tpu_custom_call.1} parent=11 // pred_check_branch
          %235 = sbr.rel (%p233) target = $region16
        $region15: #{tpu_custom_call.1} parent=11 // pred_region
          _
        $region16: #{tpu_custom_call.1} parent=11 // pred_fallthru
          _
        // Predicated region
        $region17: #{tpu_custom_call.1} parent=11 // pred_check
          %p236 = pneg %p96
        $region18: #{tpu_custom_call.1} parent=11 // pred_check_branch
          %238 = sbr.rel (%p236) target = $region20
        $region19: #{tpu_custom_call.1} parent=11 // pred_region
          _
        $region20: #{tpu_custom_call.1} parent=11 // pred_fallthru
          _
        // Predicated region
        $region21: #{tpu_custom_call.1} parent=11 // pred_check
          %p239 = pneg %p117
        $region22: #{tpu_custom_call.1} parent=11 // pred_check_branch
          %241 = sbr.rel (%p239) target = $region24
        $region23: #{tpu_custom_call.1} parent=11 // pred_region
          _
        $region24: #{tpu_custom_call.1} parent=11 // pred_fallthru
          _
        // Predicated region
        $region25: #{tpu_custom_call.1} parent=11 // pred_check
          %p242 = pneg %p138
        $region26: #{tpu_custom_call.1} parent=11 // pred_check_branch
          %244 = sbr.rel (%p242) target = $region28
        $region27: #{tpu_custom_call.1} parent=11 // pred_region
          _
        $region28: #{tpu_custom_call.1} parent=11 // pred_fallthru
          _
        // Predicated region
        $region29: #{tpu_custom_call.1} parent=11 // pred_check
          %p245 = pneg %p164
        $region30: #{tpu_custom_call.1} parent=11 // pred_check_branch
          %247 = sbr.rel (%p245) target = $region32
        $region31: #{tpu_custom_call.1} parent=11 // pred_region
          %s248 = smul.u32 16, %s26
          %p249 = scmp.lt.s32.totalorder %s248, 15
          %s250 = scalar_select %p249, %s248, 15
          %s251 = smul.addr %s250, 8
          %s252 = scalar_lea.vmem %s5, %s251
          %s253 = smul.u32 16, %s26
        $region32: #{tpu_custom_call.1} parent=11 // pred_fallthru
          _
        // Predicated region
        $region33: #{tpu_custom_call.1} parent=11 // pred_check
          %p254 = pneg %p190
        $region34: #{tpu_custom_call.1} parent=11 // pred_check_branch
          %256 = sbr.rel (%p254) target = $region36
        $region35: #{tpu_custom_call.1} parent=11 // pred_region
          %p257 = scmp.lt.s32.totalorder %s26, 0
          %s258 = scalar_select %p257, %s26, 0
          %s259 = scalar_lea.vmem %s6, %s258
        $region36: #{tpu_custom_call.1} parent=11 // pred_fallthru
          _
      $region12: #{tpu_custom_call.1} parent=5 // pred_fallthru
        _
      %p260 = scmp.lt.s32.totalorder %s16, 2
      // Predicated region
      $region37: #{tpu_custom_call.1} parent=5 // pred_check
        %p261 = pneg %p260
      $region38: #{tpu_custom_call.1} parent=5 // pred_check_branch
        %263 = sbr.rel (%p261) target = $region40
      $region39: #{tpu_custom_call.1} parent=5 // pred_region
        // Predicated region
        $region41: #{tpu_custom_call.1} parent=39 // pred_check
          %p264 = pneg %p48
        $region42: #{tpu_custom_call.1} parent=39 // pred_check_branch
          %266 = sbr.rel (%p264) target = $region44
        $region43: #{tpu_custom_call.1} parent=39 // pred_region
          %p267 = scmp.lt.s32.totalorder %s23, 1
          %s268 = scalar_select %p267, %s23, 1
          %s269 = smul.addr %s268, 8
          %s270 = scalar_lea.vmem %s0, %s269
        $region44: #{tpu_custom_call.1} parent=39 // pred_fallthru
          _
      $region40: #{tpu_custom_call.1} parent=5 // pred_fallthru
        _
      %p271 = scmp.le.s32.totalorder 1, %s16
      %p272 = scmp.lt.s32.totalorder %s16, 3
      %p273 = pnand %p271, %p272
      %p274 = pneg %p273
      // Predicated region
      $region45: #{tpu_custom_call.1} parent=5 // pred_check
        _
      $region46: #{tpu_custom_call.1} parent=5 // pred_check_branch
        %276 = sbr.rel (%p273) target = $region48
      $region47: #{tpu_custom_call.1} parent=5 // pred_region
        %s277 = ssub.s32 %s16, 1
        %p278 = scmp.lt.s32.totalorder %s25, 1
        %s279 = scalar_select %p278, %s25, 1
        %s280 = smul.addr %s279, 8
        %s281 = scalar_lea.vmem %s0, %s280
        %p282 = pneg %p54
        %p283 = pneg %p51
        %p284 = pneg %p75
        %p285 = pneg %p72
        %p286 = pneg %p96
        %p287 = pneg %p93
        %p288 = pneg %p117
        %p289 = pneg %p114
        %p290 = pneg %p138
        %p291 = pneg %p135
        %s292 = smul.u32 16, %s26
        %p293 = scmp.lt.s32.totalorder %s292, 15
        %s294 = scalar_select %p293, %s292, 15
        %s295 = smul.addr %s294, 8
        %s296 = scalar_lea.vmem %s5, %s295
        %p297 = pneg %p164
        %p298 = pneg %p161
        %p299 = scmp.lt.s32.totalorder %s26, 0
        %s300 = scalar_select %p299, %s26, 0
        %s301 = scalar_lea.vmem %s6, %s300
        %p302 = pneg %p190
        %p303 = pneg %p187
        %p304 = pneg %p218
        %p305 = pneg %p215
        %s306 = sand.u32 %s205, 1
        %s307 = scalar_lea.sflag [#allocation4], %s306
        %s308 = sand.u32 %s205, 1
        %s309 = smul.addr %s308, 8
        %s310 = scalar_lea.vmem [#allocation3], %s309
        %p311 = scmp.lt.s32.totalorder %s25, 1
        %s312 = scalar_select %p311, %s25, 1
        %s313 = smul.addr %s312, 8
        %s314 = scalar_lea.vmem %s0, %s313
        %s315 = smul.u32 16, %s26
        %p316 = scmp.lt.s32.totalorder %s315, 15
        %s317 = scalar_select %p316, %s315, 15
        %s318 = smul.addr %s317, 8
        %s319 = scalar_lea.vmem %s5, %s318
        %s320 = smul.u32 16, %s26
        %p321 = scmp.lt.s32.totalorder %s26, 0
        %s322 = scalar_select %p321, %s26, 0
        %s323 = scalar_lea.vmem %s6, %s322
        %p324 = scmp.eq.s32.totalorder %s26, 0
        // Predicated region
        $region49: #{tpu_custom_call.1} parent=47 // pred_check
          %p325 = pneg %p324
        $region50: #{tpu_custom_call.1} parent=47 // pred_check_branch
          %327 = sbr.rel (%p325) target = $region52
        $region51: #{tpu_custom_call.1} parent=47 // pred_region
          %v328 = vld [vmem:[%s314] sm:$0xff]
          %v329 = vld [vmem:[%s1] sm:$0xff]
          %v330 = vld [vmem:[%s1 + $0x8] sm:$0xff]
          %v331 = vld [vmem:[%s1 + $0x10] sm:$0xff]
          %v332 = vld [vmem:[%s1 + $0x18] sm:$0xff]
          %v333 = vld [vmem:[%s2] sm:$0x1]
          %v335 = vlaneseq
          %v336 = vshrl.u32 %v335, 7
          %v337 = vsub.s32 0, %v336
          %v338 = vrot.slane %v333, %v337
          %vm340 = vcmask 261120
          %v342 = vsel %vm340, %v328, 0
          %v345 = vsel %vm340, %v329, 0
          %v348 = vsel %vm340, %v330, 0
          %v351 = vsel %vm340, %v331, 0
          %v354 = vsel %vm340, %v332, 0
          %356 = vmatprep.subr.mxu0 0.0
          %357 = vmatpush1.xpose.msra.mxu0 %v345
          %358 = vmatprep.subr.mxu0 0.0
          %359 = vmatpush1.xpose.msra.mxu0 %v348
          %360 = vmatprep.subr.mxu0 0.0
          %361 = vmatpush1.xpose.msra.mxu0 %v351
          %362 = vmatprep.subr.mxu0 0.0
          %363 = vmatpush1.xpose.msra.mxu0 %v354
          %364 = vmatprep.subr.mxu0 0.0
          %365 = vmatpush1.xpose.msra.mxu0 0.0
          %366 = vmatprep.subr.mxu0 0.0
          %367 = vmatpush1.xpose.msra.mxu0 0.0
          %368 = vmatprep.subr.mxu0 0.0
          %369 = vmatpush1.xpose.msra.mxu0 0.0
          %370 = vmatprep.subr.mxu0 0.0
          %371 = vmatpush1.xpose.msra.mxu0 0.0
          %372 = vmatprep.subr.mxu0 0.0
          %373 = vmatpush1.xpose.msra.mxu0 0.0
          %374 = vmatprep.subr.mxu0 0.0
          %375 = vmatpush1.xpose.msra.mxu0 0.0
          %376 = vmatprep.subr.mxu0 0.0
          %377 = vmatpush1.xpose.msra.mxu0 0.0
          %378 = vmatprep.subr.mxu0 0.0
          %379 = vmatpush1.xpose.msra.mxu0 0.0
          %380 = vmatprep.subr.mxu0 0.0
          %381 = vmatpush1.xpose.msra.mxu0 0.0
          %382 = vmatprep.subr.mxu0 0.0
          %383 = vmatpush1.xpose.msra.mxu0 0.0
          %384 = vmatprep.subr.mxu0 0.0
          %385 = vmatpush1.xpose.msra.mxu0 0.0
          %386 = vmatprep.subr.mxu0 0.0
          %387 = vmatpush1.xpose.msra.mxu0 0.0
          %388 = vmatprep.subr.mxu0 0.0
          %389 = vmatpush1.xpose.msra.mxu0 0.0
          %390 = vmatprep.subr.mxu0 0.0
          %391 = vmatpush1.xpose.msra.mxu0 0.0
          %392 = vmatprep.subr.mxu0 0.0
          %393 = vmatpush1.xpose.msra.mxu0 0.0
          %394 = vmatprep.subr.mxu0 0.0
          %395 = vmatpush1.xpose.msra.mxu0 0.0
          %396 = vmatprep.subr.mxu0 0.0
          %397 = vmatpush1.xpose.msra.mxu0 0.0
          %398 = vmatprep.subr.mxu0 0.0
          %399 = vmatpush1.xpose.msra.mxu0 0.0
          %400 = vmatprep.subr.mxu0 0.0
          %401 = vmatpush1.xpose.msra.mxu0 0.0
          %402 = vmatprep.subr.mxu0 0.0
          %403 = vmatpush1.xpose.msra.mxu0 0.0
          %404 = vmatprep.subr.mxu0 0.0
          %405 = vmatpush1.xpose.msra.mxu0 0.0
          %406 = vmatprep.subr.mxu0 0.0
          %407 = vmatpush1.xpose.msra.mxu0 0.0
          %408 = vmatprep.subr.mxu0 0.0
          %409 = vmatpush1.xpose.msra.mxu0 0.0
          %410 = vmatprep.subr.mxu0 0.0
          %411 = vmatpush1.xpose.msra.mxu0 0.0
          %412 = vmatprep.subr.mxu0 0.0
          %413 = vmatpush1.xpose.msra.mxu0 0.0
          %414 = vmatprep.subr.mxu0 0.0
          %415 = vmatpush1.xpose.msra.mxu0 0.0
          %416 = vmatprep.subr.mxu0 0.0
          %417 = vmatpush1.xpose.msra.mxu0 0.0
          %418 = vmatprep.subr.mxu0 0.0
          %419 = vmatpush1.xpose.msra.mxu0 0.0
          %420 = vmatprep.mubr.f32.mxu0 0.0
          %421 = vmatmul.mubr.f32.gmra.mrb[0].mxu0 %v342
          %v422 = vpop.f32.mrb[0].mxu0
          %v423 = vadd.f32 %v338, %v422
          %v424 = vpop.f32.mrb[0].mxu0
          %425 = vdwg.mxu0
          %v426 = vmul.f32 %v423, 0.5
          %v427 = vmul.f32 %v423, 0.70710677
          %v428 = verf.f32.pop %v427
          %v429 = vadd.f32 %v428, 1.0
          %v430 = vmul.f32 %v426, %v429
          %v431 = vsel %vm340, %v430, 0.0
          %432 = vadd.xlane.f32.xlu0 %v431
          %v433 = vpop.xlane.xlu0 %432
          %v434 = vrcp.pop 32.0
          %v435 = vmul.f32 %v433, %v434
          %v436 = vsub.f32 %v430, %v435
          %v437 = vmul.f32 %v436, %v436
          %v438 = vsel %vm340, %v437, 0.0
          %439 = vadd.xlane.f32.xlu0 %v438
          %v440 = vpop.xlane.xlu0 %439
          %v441 = vmul.f32 %v440, %v434
          %v442 = vadd.f32 %v441, 1e-05
          %v443 = vrsqrt.pop %v442
          %v444 = vmul.f32 %v436, %v443
          %v445 = vld [vmem:[%s3] sm:$0x1]
          %v447 = vlaneseq
          %v448 = vshrl.u32 %v447, 7
          %v449 = vsub.s32 0, %v448
          %v450 = vrot.slane %v445, %v449
          %v452 = vmul.f32 %v444, %v450
          %v453 = vld [vmem:[%s4] sm:$0x1]
          %v455 = vlaneseq
          %v456 = vshrl.u32 %v455, 7
          %v457 = vsub.s32 0, %v456
          %v458 = vrot.slane %v453, %v457
          %v460 = vadd.f32 %v452, %v458
          %461 = vst.msk [vmem:[#allocation2] sm:$0xff] %vm340, %v460
        $region52: #{tpu_custom_call.1} parent=47 // pred_fallthru
          _
        %v462 = vld [vmem:[#allocation2] sm:$0xff]
        %v463 = vld [vmem:[%s319] sm:$0xff]
        %v464 = vld [vmem:[%s319 + $0x8] sm:$0xff]
        %v465 = vld [vmem:[%s319 + $0x10] sm:$0xff]
        %v466 = vld [vmem:[%s319 + $0x18] sm:$0xff]
        %v467 = vld [vmem:[%s319 + $0x20] sm:$0xff]
        %v468 = vld [vmem:[%s319 + $0x28] sm:$0xff]
        %v469 = vld [vmem:[%s319 + $0x30] sm:$0xff]
        %v470 = vld [vmem:[%s319 + $0x38] sm:$0xff]
        %v471 = vld [vmem:[%s319 + $0x40] sm:$0xff]
        %v472 = vld [vmem:[%s319 + $0x48] sm:$0xff]
        %v473 = vld [vmem:[%s319 + $0x50] sm:$0xff]
        %v474 = vld [vmem:[%s319 + $0x58] sm:$0xff]
        %v475 = vld [vmem:[%s319 + $0x60] sm:$0xff]
        %v476 = vld [vmem:[%s319 + $0x68] sm:$0xff]
        %v477 = vld [vmem:[%s319 + $0x70] sm:$0xff]
        %v478 = vld [vmem:[%s319 + $0x78] sm:$0xff]
        %v479 = vld [vmem:[%s323] sm:$0x1]
        %v481 = vlaneseq
        %v482 = vshrl.u32 %v481, 7
        %v483 = vsub.s32 0, %v482
        %v484 = vrot.slane %v479, %v483
        %vm486 = vcmask 261120
        %v488 = vsel %vm486, %v462, 0
        %v491 = vsel %vm486, %v463, 0
        %v494 = vsel %vm486, %v464, 0
        %v497 = vsel %vm486, %v465, 0
        %v500 = vsel %vm486, %v466, 0
        %v503 = vsel %vm486, %v467, 0
        %v506 = vsel %vm486, %v468, 0
        %v509 = vsel %vm486, %v469, 0
        %v512 = vsel %vm486, %v470, 0
        %v515 = vsel %vm486, %v471, 0
        %v518 = vsel %vm486, %v472, 0
        %v521 = vsel %vm486, %v473, 0
        %v524 = vsel %vm486, %v474, 0
        %v527 = vsel %vm486, %v475, 0
        %v530 = vsel %vm486, %v476, 0
        %v533 = vsel %vm486, %v477, 0
        %v536 = vsel %vm486, %v478, 0
        %538 = vmatprep.subr.mxu0 0.0
        %539 = vmatpush1.xpose.msra.mxu0 %v491
        %540 = vmatprep.subr.mxu0 0.0
        %541 = vmatpush1.xpose.msra.mxu0 %v494
        %542 = vmatprep.subr.mxu0 0.0
        %543 = vmatpush1.xpose.msra.mxu0 %v497
        %544 = vmatprep.subr.mxu0 0.0
        %545 = vmatpush1.xpose.msra.mxu0 %v500
        %546 = vmatprep.subr.mxu0 0.0
        %547 = vmatpush1.xpose.msra.mxu0 %v503
        %548 = vmatprep.subr.mxu0 0.0
        %549 = vmatpush1.xpose.msra.mxu0 %v506
        %550 = vmatprep.subr.mxu0 0.0
        %551 = vmatpush1.xpose.msra.mxu0 %v509
        %552 = vmatprep.subr.mxu0 0.0
        %553 = vmatpush1.xpose.msra.mxu0 %v512
        %554 = vmatprep.subr.mxu0 0.0
        %555 = vmatpush1.xpose.msra.mxu0 %v515
        %556 = vmatprep.subr.mxu0 0.0
        %557 = vmatpush1.xpose.msra.mxu0 %v518
        %558 = vmatprep.subr.mxu0 0.0
        %559 = vmatpush1.xpose.msra.mxu0 %v521
        %560 = vmatprep.subr.mxu0 0.0
        %561 = vmatpush1.xpose.msra.mxu0 %v524
        %562 = vmatprep.subr.mxu0 0.0
        %563 = vmatpush1.xpose.msra.mxu0 %v527
        %564 = vmatprep.subr.mxu0 0.0
        %565 = vmatpush1.xpose.msra.mxu0 %v530
        %566 = vmatprep.subr.mxu0 0.0
        %567 = vmatpush1.xpose.msra.mxu0 %v533
        %568 = vmatprep.subr.mxu0 0.0
        %569 = vmatpush1.xpose.msra.mxu0 %v536
        %570 = vmatprep.subr.mxu0 0.0
        %571 = vmatpush1.xpose.msra.mxu0 0.0
        %572 = vmatprep.subr.mxu0 0.0
        %573 = vmatpush1.xpose.msra.mxu0 0.0
        %574 = vmatprep.subr.mxu0 0.0
        %575 = vmatpush1.xpose.msra.mxu0 0.0
        %576 = vmatprep.subr.mxu0 0.0
        %577 = vmatpush1.xpose.msra.mxu0 0.0
        %578 = vmatprep.subr.mxu0 0.0
        %579 = vmatpush1.xpose.msra.mxu0 0.0
        %580 = vmatprep.subr.mxu0 0.0
        %581 = vmatpush1.xpose.msra.mxu0 0.0
        %582 = vmatprep.subr.mxu0 0.0
        %583 = vmatpush1.xpose.msra.mxu0 0.0
        %584 = vmatprep.subr.mxu0 0.0
        %585 = vmatpush1.xpose.msra.mxu0 0.0
        %586 = vmatprep.subr.mxu0 0.0
        %587 = vmatpush1.xpose.msra.mxu0 0.0
        %588 = vmatprep.subr.mxu0 0.0
        %589 = vmatpush1.xpose.msra.mxu0 0.0
        %590 = vmatprep.subr.mxu0 0.0
        %591 = vmatpush1.xpose.msra.mxu0 0.0
        %592 = vmatprep.subr.mxu0 0.0
        %593 = vmatpush1.xpose.msra.mxu0 0.0
        %594 = vmatprep.subr.mxu0 0.0
        %595 = vmatpush1.xpose.msra.mxu0 0.0
        %596 = vmatprep.subr.mxu0 0.0
        %597 = vmatpush1.xpose.msra.mxu0 0.0
        %598 = vmatprep.subr.mxu0 0.0
        %599 = vmatpush1.xpose.msra.mxu0 0.0
        %600 = vmatprep.subr.mxu0 0.0
        %601 = vmatpush1.xpose.msra.mxu0 0.0
        %602 = vmatprep.mubr.f32.mxu0 0.0
        %603 = vmatmul.mubr.f32.gmra.mrb[0].mxu0 %v488
        %v604 = vpop.f32.mrb[0].mxu0
        %v605 = vadd.f32 %v484, %v604
        %v606 = vpop.f32.mrb[0].mxu0
        %607 = vdwg.mxu0
        %608 = vst [vmem:[%s310] sm:$0xff] %v605
        %s609 = sand.u32 %s205, 1
        %s610 = scalar_lea.sflag [#allocation4], %s609
        %s611 = sand.u32 %s205, 1
        %s612 = smul.addr %s611, 8
        %s613 = scalar_lea.vmem [#allocation3], %s612
        // Predicated region
        $region53: #{tpu_custom_call.1} parent=47 // pred_check
          %p614 = pneg %p215
        $region54: #{tpu_custom_call.1} parent=47 // pred_check_branch
          %616 = sbr.rel (%p614) target = $region56
        $region55: #{tpu_custom_call.1} parent=47 // pred_region
          %s618 = ssub.s32 128, 128
          %619 = vsyncadd %s610, %s618
          %s620 = sadd.s32 %s26, %s25
          %s621 = smul.addr %s620, 128
          %s622 = scalar_lea.hbm %s7, %s621
          %s624 = sshll.u32 %s613, 4
          %s625 = int_to_ptr.vmem [resolvable:$true] %s624
          %627 = dma.vmem_to_hbm [thread:$0]  %s625, 128, %s622, %s610
        $region56: #{tpu_custom_call.1} parent=47 // pred_fallthru
          _
      $region48: #{tpu_custom_call.1} parent=5 // pred_fallthru
        _
      %p628 = scmp.le.s32.totalorder 2, %s16
      // Predicated region
      $region57: #{tpu_custom_call.1} parent=5 // pred_check
        %p629 = pneg %p628
      $region58: #{tpu_custom_call.1} parent=5 // pred_check_branch
        %631 = sbr.rel (%p629) target = $region60
      $region59: #{tpu_custom_call.1} parent=5 // pred_region
        %s632 = ssub.s32 %s16, 2
        // Predicated region
        $region61: #{tpu_custom_call.1} parent=59 // pred_check
          %p633 = pneg %p221
        $region62: #{tpu_custom_call.1} parent=59 // pred_check_branch
          %635 = sbr.rel (%p633) target = $region64
        $region63: #{tpu_custom_call.1} parent=59 // pred_region
          %s636 = sand.u32 %s206, 1
          %s637 = scalar_lea.sflag [#allocation4], %s636
          %s638 = sand.u32 %s206, 1
          %s639 = smul.addr %s638, 8
          %s640 = scalar_lea.vmem [#allocation3], %s639
          %641 = dma.done %s637, 128
        $region64: #{tpu_custom_call.1} parent=59 // pred_fallthru
          _
      $region60: #{tpu_custom_call.1} parent=5 // pred_fallthru
        _
    $region6: #{tpu_custom_call.1} parent=1 // loop_footer
      %s20 = sadd.s32 1, %s16
    $region7: #{tpu_custom_call.1} parent=1 // loop_footer_branch
      %15 = sbr.rel target = $region3
    $region8: #{tpu_custom_call.1} parent=1 // loop_exit
      _
    %642 = vsyncpa [#allocation4], 1
    %s643 = scalar_lea.sflag [#allocation4], 1
    %644 = vsyncpa %s643, 1

</llo_original>
